<compile_context>
chip_gen: v7x
topology: tpu7x:2x2x1
jax: 0.10.0
libtpu: 0.0.40
codegen_flags: <defaults>
</compile_context>

<pallas_src>
import jax
import jax.numpy as jnp
from jax.experimental import pallas as pl
from jax.experimental.pallas import tpu as pltpu


def _round_up(n, m):
    return ((n + m - 1) // m) * m


def _logr_kernel(x_ref, w_ref, b_ref, o_ref):
    # x_ref: (tb, F_in)       streamed batch tile (double-buffered by Pallas)
    # w_ref: (F_in, Fo_blk)   pre-transposed weight, resident across the grid
    # b_ref: (1, Fo_blk)      resident bias (f32)
    # o_ref: (tb, Fo_blk)     output tile
    z = jnp.dot(x_ref[...], w_ref[...], preferred_element_type=jnp.float32)
    z = z + b_ref[...]
    # Exact sigmoid: exp runs on the EUP, the divide on the VPU; both have
    # plenty of slack in this memory-bound kernel.
    sig = 1.0 / (1.0 + jnp.exp(-z))
    o_ref[...] = sig.astype(o_ref.dtype)


def logr_forward(x, weight, bias, *, block_batch=1024, mxu_dtype=None,
                 vmem_budget_bytes=16 * 1024 * 1024):
    """sigmoid(x @ weight.T + bias) as a batch-tiled Pallas TPU call.

    x:      (B, F_in)
    weight: (F_out, F_in)   (PyTorch nn.Linear layout)
    bias:   (F_out,)
    mxu_dtype: e.g. jnp.bfloat16 to feed the MXU in bf16 (valid on v5e/v6e/v7x;
               accumulation, bias add and sigmoid stay f32).  Only use it when
               x already arrives in that dtype or the cast fuses upstream —
               a standalone cast here is an extra HBM pass.
    """
    B, F_in = x.shape
    F_out = weight.shape[0]
    out_dtype = x.dtype

    if mxu_dtype is not None and x.dtype != mxu_dtype:
        x = x.astype(mxu_dtype)
        weight = weight.astype(mxu_dtype)
    in_dtype = x.dtype

    # ---- Wrapper-side layout prep (done once) ------------------------------
    # Pre-transpose the weight so the MXU consumes it in stored layout
    # (no in-kernel XLU relayout).
    w_t = weight.T  # (F_in, F_out)

    # Output lane handling: for F_out <= 128 (or a multiple of 128) store the
    # true width — masked stores, but no 8-16x write amplification and no
    # post-kernel slice.  Pad to a multiple of 128 only for large ragged F_out.
    if F_out > 128 and F_out % 128 != 0:
        f_out_blk = _round_up(F_out, 128)
        w_t = jnp.pad(w_t, ((0, 0), (0, f_out_blk - F_out)))
        b2d = jnp.pad(bias, (0, f_out_blk - F_out)).reshape(1, f_out_blk)
    else:
        f_out_blk = F_out
        b2d = bias.reshape(1, F_out)
    b2d = b2d.astype(jnp.float32)

    # Batch tile: multiple of 8 sublanes, sized so
    #   2 x (tb, F_in) input buffers + 2 x (tb, Fo_blk) output buffers
    #   + double-buffered resident weight + bias
    # fits a conservative VMEM budget (safe on v5e's 16 MiB scoped default and
    # v7x's 64 MiB physical VMEM).
    dsz_in = jnp.dtype(in_dtype).itemsize
    dsz_out = jnp.dtype(out_dtype).itemsize
    weight_bytes = 2 * F_in * f_out_blk * dsz_in + 2 * f_out_blk * 4
    per_row = 2 * F_in * dsz_in + 2 * f_out_blk * dsz_out
    avail = max(vmem_budget_bytes - weight_bytes, per_row * 8)
    tb = (avail // per_row) // 8 * 8
    tb = int(max(8, min(tb, block_batch, _round_up(B, 8))))
    # TODO(synk): for very large F_in add a K-reduction grid axis ("arbitrary",
    # placed last) with an f32 VMEM accumulator instead of shrinking tb.

    # No batch padding: Pallas handles the ragged final tile (OOB rows are
    # never written back).
    grid = (pl.cdiv(B, tb),)

    cost = pl.CostEstimate(
        flops=2 * B * F_in * F_out,
        transcendentals=B * F_out,
        bytes_accessed=(B * F_in * dsz_in + F_in * f_out_blk * dsz_in
                        + f_out_blk * 4 + B * f_out_blk * dsz_out),
    )

    vmem_limit = int(min(max(2 * (weight_bytes + tb * per_row),
                             32 * 1024 * 1024),
                         60 * 1024 * 1024))

    out = pl.pallas_call(
        _logr_kernel,
        out_shape=jax.ShapeDtypeStruct((B, f_out_blk), out_dtype),
        grid=grid,
        in_specs=[
            # x: one batch tile per grid step (double-buffered DMA).
            pl.BlockSpec((tb, F_in), lambda i: (i, 0)),
            # weight: same block every step -> stays resident in VMEM.
            # TODO(synk): single-buffer this (pipeline_mode=pl.Buffered(1)) on
            # v7x to reclaim VMEM for a larger tb.
            pl.BlockSpec((F_in, f_out_blk), lambda i: (0, 0)),
            # bias: resident.
            pl.BlockSpec((1, f_out_blk), lambda i: (0, 0)),
        ],
        out_specs=pl.BlockSpec((tb, f_out_blk), lambda i: (i, 0)),
        compiler_params=pltpu.CompilerParams(
            # Batch tiles are independent.
            # TODO(synk): use pltpu.CORE_PARALLEL on v7x (2 TC/chip) to shard
            # the batch axis across both TensorCores.
            dimension_semantics=("parallel",),
            vmem_limit_bytes=vmem_limit,
        ),
        cost_estimate=cost,
    )(x, w_t, b2d)

    if f_out_blk != F_out:
        out = out[:, :F_out]
    return out


if __name__ == "__main__":
    # Small shapes consistent with LogR(in_features=32, out_features=16).
    B, F_in, F_out = 8, 32, 16

    key = jax.random.PRNGKey(0)
    kx, kw, kb = jax.random.split(key, 3)

    x = jax.random.normal(kx, (B, F_in), dtype=jnp.float32)
    # Deterministic "nn.Linear"-style params (uniform in +/- 1/sqrt(in_features)).
    bound = 1.0 / (F_in ** 0.5)
    weight = jax.random.uniform(kw, (F_out, F_in), jnp.float32, -bound, bound)
    bias = jax.random.uniform(kb, (F_out,), jnp.float32, -bound, bound)

    out = jax.block_until_ready(logr_forward(x, weight, bias))

    # Reference check in plain JAX (exact sigmoid in the kernel -> tight tol).
    ref = jax.nn.sigmoid(x @ weight.T + bias)
    assert out.shape == (B, F_out)
    assert jnp.allclose(out, ref, atol=1e-4, rtol=1e-4), \
        float(jnp.max(jnp.abs(out - ref)))

    print("KERNEL_OK")
</pallas_src>

<mosaic_0001>
module attributes {stable_mosaic.version = 11 : i64} {
  func.func @_logr_kernel(%arg0: i32, %arg1: memref<8x32xf32, #tpu.memory_space<vmem>>, %arg2: memref<32x16xf32, #tpu.memory_space<vmem>>, %arg3: memref<1x16xf32, #tpu.memory_space<vmem>>, %arg4: memref<8x16xf32, #tpu.memory_space<vmem>>) attributes {dimension_semantics = [#tpu.dimension_semantics<parallel>], iteration_bounds = array<i64: 1>, scalar_prefetch = 0 : i64, scratch_operands = 0 : i64, tpu.core_type = #tpu.core_type<tc>, window_params = [{transform_indices = @transform_0, window_bounds = array<i64: 8, 32>}, {pipeline_mode = #tpu.pipeline_mode<synchronous>, transform_indices = @transform_1, window_bounds = array<i64: 32, 16>}, {pipeline_mode = #tpu.pipeline_mode<synchronous>, transform_indices = @transform_2, window_bounds = array<i64: 1, 16>}, {transform_indices = @transform_3, window_bounds = array<i64: 8, 16>}]} {
    %c0 = arith.constant 0 : index
    %c0_0 = arith.constant 0 : index
    %0 = vector.load %arg1[%c0, %c0_0] : memref<8x32xf32, #tpu.memory_space<vmem>>, vector<8x32xf32>
    %c0_1 = arith.constant 0 : index
    %c0_2 = arith.constant 0 : index
    %1 = vector.load %arg2[%c0_1, %c0_2] : memref<32x16xf32, #tpu.memory_space<vmem>>, vector<32x16xf32>
    %cst = arith.constant dense<0.000000e+00> : vector<8x16xf32>
    %2 = tpu.matmul %0, %1, %cst {dimension_numbers = #tpu.dot_dimension_numbers<[1], [0], [0], [1], [0, 0, 1, 1], [], []>} : vector<8x32xf32>, vector<32x16xf32>, vector<8x16xf32> -> vector<8x16xf32>
    %c0_3 = arith.constant 0 : index
    %c0_4 = arith.constant 0 : index
    %3 = vector.load %arg3[%c0_3, %c0_4] : memref<1x16xf32, #tpu.memory_space<vmem>>, vector<1x16xf32>
    %4 = vector.broadcast %3 : vector<1x16xf32> to vector<8x16xf32>
    %5 = arith.addf %2, %4 : vector<8x16xf32>
    %cst_5 = arith.constant 0.000000e+00 : f32
    %6 = vector.broadcast %cst_5 : f32 to vector<8x16xf32>
    %7 = arith.subf %6, %5 : vector<8x16xf32>
    %8 = math.exp %7 : vector<8x16xf32>
    %cst_6 = arith.constant 1.000000e+00 : f32
    %9 = vector.broadcast %cst_6 : f32 to vector<8x16xf32>
    %10 = arith.addf %9, %8 : vector<8x16xf32>
    %cst_7 = arith.constant 1.000000e+00 : f32
    %11 = vector.broadcast %cst_7 : f32 to vector<8x16xf32>
    %12 = arith.divf %11, %10 : vector<8x16xf32>
    %c0_8 = arith.constant 0 : index
    %c0_9 = arith.constant 0 : index
    %13 = vector.load %arg4[%c0_8, %c0_9] : memref<8x16xf32, #tpu.memory_space<vmem>>, vector<8x16xf32>
    tpu.vector_store %arg4[%c0_8, %c0_9], %12 {strides = array<i32>} : memref<8x16xf32, #tpu.memory_space<vmem>>, vector<8x16xf32>,
    return
  }
  func.func @transform_0(%arg0: i32) -> (i32, i32) {
    %c0_i32 = arith.constant 0 : i32
    %c0_i32_0 = arith.constant 0 : i32
    return %arg0, %c0_i32 : i32, i32
  }
  func.func @transform_1(%arg0: i32) -> (i32, i32) {
    %c0_i32 = arith.constant 0 : i32
    %c0_i32_0 = arith.constant 0 : i32
    %c0_i32_1 = arith.constant 0 : i32
    return %c0_i32, %c0_i32_0 : i32, i32
  }
  func.func @transform_2(%arg0: i32) -> (i32, i32) {
    %c0_i32 = arith.constant 0 : i32
    %c0_i32_0 = arith.constant 0 : i32
    %c0_i32_1 = arith.constant 0 : i32
    return %c0_i32, %c0_i32_0 : i32, i32
  }
  func.func @transform_3(%arg0: i32) -> (i32, i32) {
    %c0_i32 = arith.constant 0 : i32
    %c0_i32_0 = arith.constant 0 : i32
    return %arg0, %c0_i32 : i32, i32
  }
}

</mosaic_0001>

<llo_original>
// kernel: tpu_custom_call.1
$region0: #{tpu_custom_call.1}
  #allocation0 [shape = 'u32[]', space=smem, size = 0x4, offset = 0x4, fixed_abs, tag = 'smem constant byte address 0x4 - core index']
  #allocation1 [shape = 'u32[144,128]{1,0:T(1,128)}', space=vmem, size = 0x12000, scoped, tag = 'internal scratch']
  %s0 = inlined_call_operand.vmem [shape: f32[8,32], index: 0, kind: input, shape index: {}]
  %s1 = inlined_call_operand.vmem [shape: f32[32,16], index: 1, kind: input, shape index: {}]
  %s2 = inlined_call_operand.vmem [shape: f32[1,16], index: 2, kind: input, shape index: {}]
  %s3 = inlined_call_operand.hbm [shape: f32[8,16], index: 3, kind: output, shape index: {}]
  %s4 = sld [smem:[#allocation0]]
  $region22: #{tpu_custom_call.1} parent=0
    _
  %s6 = ssub.s32 1, %s4
  %s7 = scalar_select 0, %s6, %s4
  $region1: #{tpu_custom_call.1} parent=0
    #allocation2 [shape = 'u8[4096]{0}', space=vmem, size = 0x1000, scoped, tag = 'output window, operand 0, single buffered']
    #allocation3 [shape = 's32[1]{0}', space=sflag, size = 0x4, scoped, tag = 'scoped memory for tpu_custom_call.1']
    %8 = vsyncpa [#allocation3], 0
    // Predicated region
    $region2: #{tpu_custom_call.1} parent=1 // pred_check
      _
    $region3: #{tpu_custom_call.1} parent=1 // pred_check_branch
      %10 = sbr.rel (0) target = $region5
    $region4: #{tpu_custom_call.1} parent=1 // pred_region
      _
    $region5: #{tpu_custom_call.1} parent=1 // pred_fallthru
      _
    // Predicated region
    $region6: #{tpu_custom_call.1} parent=1 // pred_check
      _
    $region7: #{tpu_custom_call.1} parent=1 // pred_check_branch
      %12 = sbr.rel (0) target = $region9
    $region8: #{tpu_custom_call.1} parent=1 // pred_region
      _
    $region9: #{tpu_custom_call.1} parent=1 // pred_fallthru
      _
    // Predicated region
    $region10: #{tpu_custom_call.1} parent=1 // pred_check
      _
    $region11: #{tpu_custom_call.1} parent=1 // pred_check_branch
      %14 = sbr.rel (0) target = $region13
    $region12: #{tpu_custom_call.1} parent=1 // pred_region
      _
    $region13: #{tpu_custom_call.1} parent=1 // pred_fallthru
      _
    %v15 = vld [vmem:[%s0] sm:$0xff]
    %v16 = vld [vmem:[%s1] sm:$0xff]
    %v17 = vld [vmem:[%s1 + $0x8] sm:$0xff]
    %v18 = vld [vmem:[%s1 + $0x10] sm:$0xff]
    %v19 = vld [vmem:[%s1 + $0x18] sm:$0xff]
    %v20 = vld [vmem:[%s2] sm:$0x1]
    %v22 = vlaneseq
    %v23 = vshrl.u32 %v22, 7
    %v24 = vsub.s32 0, %v23
    %v25 = vrot.slane %v20, %v24
    %vm27 = vcmask 261120
    %v29 = vsel %vm27, %v15, 0
    %31 = vmatprep.subr.mxu0 0.0
    %32 = vmatpush1.msra.mxu0 %v16
    %33 = vmatprep.subr.mxu0 0.0
    %34 = vmatpush1.msra.mxu0 %v17
    %35 = vmatprep.subr.mxu0 0.0
    %36 = vmatpush1.msra.mxu0 %v18
    %37 = vmatprep.subr.mxu0 0.0
    %38 = vmatpush1.msra.mxu0 %v19
    %39 = vmatprep.subr.mxu0 0.0
    %40 = vmatpush1.msra.mxu0 0.0
    %41 = vmatprep.subr.mxu0 0.0
    %42 = vmatpush1.msra.mxu0 0.0
    %43 = vmatprep.subr.mxu0 0.0
    %44 = vmatpush1.msra.mxu0 0.0
    %45 = vmatprep.subr.mxu0 0.0
    %46 = vmatpush1.msra.mxu0 0.0
    %47 = vmatprep.subr.mxu0 0.0
    %48 = vmatpush1.msra.mxu0 0.0
    %49 = vmatprep.subr.mxu0 0.0
    %50 = vmatpush1.msra.mxu0 0.0
    %51 = vmatprep.subr.mxu0 0.0
    %52 = vmatpush1.msra.mxu0 0.0
    %53 = vmatprep.subr.mxu0 0.0
    %54 = vmatpush1.msra.mxu0 0.0
    %55 = vmatprep.subr.mxu0 0.0
    %56 = vmatpush1.msra.mxu0 0.0
    %57 = vmatprep.subr.mxu0 0.0
    %58 = vmatpush1.msra.mxu0 0.0
    %59 = vmatprep.subr.mxu0 0.0
    %60 = vmatpush1.msra.mxu0 0.0
    %61 = vmatprep.subr.mxu0 0.0
    %62 = vmatpush1.msra.mxu0 0.0
    %63 = vmatprep.subr.mxu0 0.0
    %64 = vmatpush1.msra.mxu0 0.0
    %65 = vmatprep.subr.mxu0 0.0
    %66 = vmatpush1.msra.mxu0 0.0
    %67 = vmatprep.subr.mxu0 0.0
    %68 = vmatpush1.msra.mxu0 0.0
    %69 = vmatprep.subr.mxu0 0.0
    %70 = vmatpush1.msra.mxu0 0.0
    %71 = vmatprep.subr.mxu0 0.0
    %72 = vmatpush1.msra.mxu0 0.0
    %73 = vmatprep.subr.mxu0 0.0
    %74 = vmatpush1.msra.mxu0 0.0
    %75 = vmatprep.subr.mxu0 0.0
    %76 = vmatpush1.msra.mxu0 0.0
    %77 = vmatprep.subr.mxu0 0.0
    %78 = vmatpush1.msra.mxu0 0.0
    %79 = vmatprep.subr.mxu0 0.0
    %80 = vmatpush1.msra.mxu0 0.0
    %81 = vmatprep.subr.mxu0 0.0
    %82 = vmatpush1.msra.mxu0 0.0
    %83 = vmatprep.subr.mxu0 0.0
    %84 = vmatpush1.msra.mxu0 0.0
    %85 = vmatprep.subr.mxu0 0.0
    %86 = vmatpush1.msra.mxu0 0.0
    %87 = vmatprep.subr.mxu0 0.0
    %88 = vmatpush1.msra.mxu0 0.0
    %89 = vmatprep.subr.mxu0 0.0
    %90 = vmatpush1.msra.mxu0 0.0
    %91 = vmatprep.subr.mxu0 0.0
    %92 = vmatpush1.msra.mxu0 0.0
    %93 = vmatprep.subr.mxu0 0.0
    %94 = vmatpush1.msra.mxu0 0.0
    %95 = vmatprep.mubr.f32.mxu0 0.0
    %96 = vmatmul.mubr.f32.gmra.mrb[0].mxu0 %v29
    %v97 = vpop.f32.mrb[0].mxu0
    %v98 = vadd.f32 %v25, %v97
    %v99 = vpop.f32.mrb[0].mxu0
    %100 = vdwg.mxu0
    %v101 = vsub.f32 0.0, %v98
    %v102 = vmul.f32 %v101, 1.442695
    %v103 = vpow.pop %v102
    %v104 = vadd.f32 %v103, 1.0
    %v105 = vrcp.pop %v104
    %v106 = vmul.f32 1.0, %v105
    %vm107 = vcmask 130048
    %108 = vst.msk [vmem:[#allocation2] sm:$0xff] %vm107, %v106
    // Predicated region
    $region14: #{tpu_custom_call.1} parent=1 // pred_check
      _
    $region15: #{tpu_custom_call.1} parent=1 // pred_check_branch
      %110 = sbr.rel (0) target = $region17
    $region16: #{tpu_custom_call.1} parent=1 // pred_region
      %s112 = ssub.s32 128, 128
      %113 = vsyncadd [#allocation3], %s112
      %s115 = sshll.u32 [#allocation2], 4
      %s116 = int_to_ptr.vmem [resolvable:$true] %s115
      %118 = dma.vmem_to_hbm [thread:$0]  %s116, 128, %s3, [#allocation3]
    $region17: #{tpu_custom_call.1} parent=1 // pred_fallthru
      _
    // Predicated region
    $region18: #{tpu_custom_call.1} parent=1 // pred_check
      _
    $region19: #{tpu_custom_call.1} parent=1 // pred_check_branch
      %120 = sbr.rel (0) target = $region21
    $region20: #{tpu_custom_call.1} parent=1 // pred_region
      %121 = dma.done [#allocation3], 128
    $region21: #{tpu_custom_call.1} parent=1 // pred_fallthru
      _
    %122 = vsyncpa [#allocation3], 1

</llo_original>
